<compile_context>
chip_gen: v6e
topology: v6e:2x2x1
jax: 0.10.0
libtpu: 0.0.40
codegen_flags: <defaults>
</compile_context>

<pallas_src>
import functools

import jax
import jax.numpy as jnp
from jax import lax
from jax.experimental import pallas as pl
from jax.experimental.pallas import tpu as pltpu


def _round_up(n, m):
    return (n + m - 1) // m * m


def _mse_partial_kernel(x_ref, w_ref, b_ref, y_ref, out_ref, *,
                        n_valid, n_total, packed_out):
    """One packed batch tile: z = x @ W_bd + b ; per-lane partial sum of (z - y)^2."""
    tb = x_ref.shape[0]
    z = jnp.dot(x_ref[...], w_ref[...], preferred_element_type=jnp.float32)  # (tb, P_OUT)
    diff = (z + b_ref[...]) - y_ref[...]                                     # bias in-kernel
    if n_valid != n_total:  # static check: only emit the mask when padding exists
        row = lax.broadcasted_iota(jnp.int32, (tb, packed_out), 0)
        lane = lax.broadcasted_iota(jnp.int32, (tb, packed_out), 1)
        flat = pl.program_id(0) * (tb * packed_out) + row * packed_out + lane
        diff = jnp.where(flat < n_valid, diff, 0.0)
    out_ref[...] = jnp.sum(diff * diff, axis=0, keepdims=True)[None]         # (1, 1, P_OUT)


@functools.partial(jax.jit, static_argnames=("block_packed_rows", "pack"))
def simple_model_forward(x, y, w_t, b, *, block_packed_rows=4096, pack=12):
    """Pallas equivalent of _SimpleModel.forward((x, y)) -> scalar MSE loss.

    w_t is the Linear weight pre-transposed to (in_features, out_features).
    """
    assert block_packed_rows % 8 == 0, "packed-row tile must be a multiple of 8 sublanes"
    batch, in_f = x.shape
    out_f = w_t.shape[1]
    assert y.shape == (batch, out_f)
    n_valid = batch * out_f  # true element count for the mean

    f32 = jnp.float32
    # TODO(synk): optionally stream x/y as bf16 (halves HBM bytes in this
    # memory-bound kernel) at the cost of small drift vs the f32 reference.
    x = x.astype(f32)
    y = y.astype(f32)

    # Lane packing: 12 * 10 = 120 lanes.  Block-diagonal weight, tiled bias.
    p_in, p_out = pack * in_f, pack * out_f
    w_bd = jnp.kron(jnp.eye(pack, dtype=f32), w_t.astype(f32))   # (p_in, p_out)
    b_t = jnp.tile(b.astype(f32), pack).reshape(1, p_out)        # (1, p_out)

    # Choose the packed-row tile; ensure >= 2 grid blocks for v7x megacore
    # unless the batch is tiny.
    rows = -(-batch // pack)                       # packed rows needed
    if rows <= 16:
        tb, num_blocks = rows, 1                   # single block == full dim (exempt from /8)
    else:
        num_blocks = max(2, -(-rows // block_packed_rows))
        tb = _round_up(-(-rows // num_blocks), 8)
    rows_p = num_blocks * tb
    n_total = rows_p * p_out

    # Pad original rows only when needed to make the packed reshape legal; the
    # in-kernel mask (not the zero rows) keeps the mean exact, since the bias
    # is added inside the kernel.
    # TODO(synk): for huge ragged batches this pad is one extra HBM pass; a
    # manual-DMA tail path (pl.ANY + make_async_copy) would remove it.
    pad_rows = rows_p * pack - batch
    if pad_rows:
        x = jnp.pad(x, ((0, pad_rows), (0, 0)))
        y = jnp.pad(y, ((0, pad_rows), (0, 0)))
    xp = x.reshape(rows_p, p_in)                   # free row-major reshape
    yp = y.reshape(rows_p, p_out)

    kernel = functools.partial(
        _mse_partial_kernel, n_valid=n_valid, n_total=n_total, packed_out=p_out)

    partials = pl.pallas_call(
        kernel,
        out_shape=jax.ShapeDtypeStruct((num_blocks, 1, p_out), f32),
        grid=(num_blocks,),
        in_specs=[
            pl.BlockSpec((tb, p_in), lambda i: (i, 0)),       # x tile (streamed)
            pl.BlockSpec((p_in, p_out), lambda i: (0, 0)),    # block-diag W (resident)
            pl.BlockSpec((1, p_out), lambda i: (0, 0)),       # tiled bias (resident)
            pl.BlockSpec((tb, p_out), lambda i: (i, 0)),      # y tile (streamed)
        ],
        out_specs=pl.BlockSpec((1, 1, p_out), lambda i: (i, 0, 0)),
        compiler_params=pltpu.CompilerParams(
            dimension_semantics=("parallel",),                # shards blocks across TCs on v7x
            vmem_limit_bytes=32 * 1024 * 1024,                # safe on v5e/v6e/v7x
        ),
    )(xp, w_bd, b_t, yp)

    # Tiny final reduction + mean in XLA (independent of grid order / padding).
    return jnp.sum(partials) / n_valid


def init_linear_params(key, in_features, out_features):
    """Deterministic init mimicking nn.Linear default (uniform +/- 1/sqrt(in))."""
    kw, kb = jax.random.split(key)
    bound = 1.0 / jnp.sqrt(jnp.float32(in_features))
    # PyTorch stores W as (out, in); we keep the transposed (in, out) layout.
    w_t = jax.random.uniform(
        kw, (in_features, out_features), jnp.float32, -bound, bound
    )
    b = jax.random.uniform(kb, (out_features,), jnp.float32, -bound, bound)
    return w_t, b


if __name__ == "__main__":
    key = jax.random.PRNGKey(0)
    kx, ky, kp = jax.random.split(key, 3)

    feat = 10  # nn.Linear(10, 10)
    w_t, b = init_linear_params(kp, feat, feat)

    # (batch, block_packed_rows) pairs exercise: ragged single-block (masked),
    # aligned single-block (mask elided), and ragged multi-block (masked,
    # parallel grid) code paths.
    for batch, tb in ((16, 4096), (20, 4096), (24, 4096), (400, 8)):
        kxb = jax.random.fold_in(kx, batch)
        kyb = jax.random.fold_in(ky, batch)
        x = jax.random.normal(kxb, (batch, feat), jnp.float32)
        y = jax.random.normal(kyb, (batch, feat), jnp.float32)

        loss = simple_model_forward(x, y, w_t, b, block_packed_rows=tb)
        jax.block_until_ready(loss)

        # Reference: same semantics as F.mse_loss(fc(x), y), mean reduction.
        ref = jnp.mean((x @ w_t + b - y) ** 2)
        assert jnp.allclose(loss, ref, rtol=1e-5, atol=1e-6), (batch, loss, ref)

    print("KERNEL_OK")
</pallas_src>

<mosaic_0001>
module attributes {stable_mosaic.version = 11 : i64} {
  func.func @_mse_partial_kernel(%arg0: i32, %arg1: memref<2x120xf32, #tpu.memory_space<vmem>>, %arg2: memref<120x120xf32, #tpu.memory_space<vmem>>, %arg3: memref<1x120xf32, #tpu.memory_space<vmem>>, %arg4: memref<2x120xf32, #tpu.memory_space<vmem>>, %arg5: memref<1x1x120xf32, #tpu.memory_space<vmem>>) attributes {dimension_semantics = [#tpu.dimension_semantics<parallel>], iteration_bounds = array<i64: 1>, scalar_prefetch = 0 : i64, scratch_operands = 0 : i64, tpu.core_type = #tpu.core_type<tc>, window_params = [{transform_indices = @transform_0, window_bounds = array<i64: 2, 120>}, {pipeline_mode = #tpu.pipeline_mode<synchronous>, transform_indices = @transform_1, window_bounds = array<i64: 120, 120>}, {pipeline_mode = #tpu.pipeline_mode<synchronous>, transform_indices = @transform_2, window_bounds = array<i64: 1, 120>}, {transform_indices = @transform_3, window_bounds = array<i64: 2, 120>}, {transform_indices = @transform_4, window_bounds = array<i64: 1, 1, 120>}]} {
    %c0 = arith.constant 0 : index
    %c0_0 = arith.constant 0 : index
    %0 = vector.load %arg1[%c0, %c0_0] : memref<2x120xf32, #tpu.memory_space<vmem>>, vector<2x120xf32>
    %c0_1 = arith.constant 0 : index
    %c0_2 = arith.constant 0 : index
    %1 = vector.load %arg2[%c0_1, %c0_2] : memref<120x120xf32, #tpu.memory_space<vmem>>, vector<120x120xf32>
    %cst = arith.constant dense<0.000000e+00> : vector<2x120xf32>
    %2 = tpu.matmul %0, %1, %cst {dimension_numbers = #tpu.dot_dimension_numbers<[1], [0], [0], [1], [0, 0, 1, 1], [], []>} : vector<2x120xf32>, vector<120x120xf32>, vector<2x120xf32> -> vector<2x120xf32>
    %c0_3 = arith.constant 0 : index
    %c0_4 = arith.constant 0 : index
    %3 = vector.load %arg3[%c0_3, %c0_4] : memref<1x120xf32, #tpu.memory_space<vmem>>, vector<1x120xf32>
    %4 = vector.broadcast %3 : vector<1x120xf32> to vector<2x120xf32>
    %5 = arith.addf %2, %4 : vector<2x120xf32>
    %c0_5 = arith.constant 0 : index
    %c0_6 = arith.constant 0 : index
    %6 = vector.load %arg4[%c0_5, %c0_6] : memref<2x120xf32, #tpu.memory_space<vmem>>, vector<2x120xf32>
    %7 = arith.subf %5, %6 : vector<2x120xf32>
    %8 = tpu.iota {dimensions = array<i32: 0>} : vector<2x120xi32>
    %9 = tpu.iota {dimensions = array<i32: 1>} : vector<2x120xi32>
    %c240_i32 = arith.constant 240 : i32
    %10 = arith.muli %arg0, %c240_i32 : i32
    %c120_i32 = arith.constant 120 : i32
    %11 = vector.broadcast %c120_i32 : i32 to vector<2x120xi32>
    %12 = arith.muli %8, %11 : vector<2x120xi32>
    %13 = vector.broadcast %10 : i32 to vector<2x120xi32>
    %14 = arith.addi %13, %12 : vector<2x120xi32>
    %15 = arith.addi %14, %9 : vector<2x120xi32>
    %c160_i32 = arith.constant 160 : i32
    %16 = vector.broadcast %c160_i32 : i32 to vector<2x120xi32>
    %17 = arith.cmpi slt, %15, %16 : vector<2x120xi32>
    %cst_7 = arith.constant 0.000000e+00 : f32
    %18 = vector.broadcast %cst_7 : f32 to vector<2x120xf32>
    %19 = arith.select %17, %7, %18 : vector<2x120xi1>, vector<2x120xf32>
    %20 = arith.mulf %19, %19 : vector<2x120xf32>
    %cst_8 = arith.constant dense<0.000000e+00> : vector<120xf32>
    %21 = vector.multi_reduction <add>, %20, %cst_8 [0] : vector<2x120xf32> to vector<120xf32>
    %22 = vector.shape_cast %21 : vector<120xf32> to vector<1x120xf32>
    %23 = vector.shape_cast %22 : vector<1x120xf32> to vector<1x1x120xf32>
    %c0_9 = arith.constant 0 : index
    %c0_10 = arith.constant 0 : index
    %c0_11 = arith.constant 0 : index
    %24 = vector.load %arg5[%c0_9, %c0_10, %c0_11] : memref<1x1x120xf32, #tpu.memory_space<vmem>>, vector<1x1x120xf32>
    tpu.vector_store %arg5[%c0_9, %c0_10, %c0_11], %23 {strides = array<i32>} : memref<1x1x120xf32, #tpu.memory_space<vmem>>, vector<1x1x120xf32>,
    return
  }
  func.func @transform_0(%arg0: i32) -> (i32, i32) {
    %c0_i32 = arith.constant 0 : i32
    %c0_i32_0 = arith.constant 0 : i32
    return %arg0, %c0_i32 : i32, i32
  }
  func.func @transform_1(%arg0: i32) -> (i32, i32) {
    %c0_i32 = arith.constant 0 : i32
    %c0_i32_0 = arith.constant 0 : i32
    %c0_i32_1 = arith.constant 0 : i32
    return %c0_i32, %c0_i32_0 : i32, i32
  }
  func.func @transform_2(%arg0: i32) -> (i32, i32) {
    %c0_i32 = arith.constant 0 : i32
    %c0_i32_0 = arith.constant 0 : i32
    %c0_i32_1 = arith.constant 0 : i32
    return %c0_i32, %c0_i32_0 : i32, i32
  }
  func.func @transform_3(%arg0: i32) -> (i32, i32) {
    %c0_i32 = arith.constant 0 : i32
    %c0_i32_0 = arith.constant 0 : i32
    return %arg0, %c0_i32 : i32, i32
  }
  func.func @transform_4(%arg0: i32) -> (i32, i32, i32) {
    %c0_i32 = arith.constant 0 : i32
    %c0_i32_0 = arith.constant 0 : i32
    %c0_i32_1 = arith.constant 0 : i32
    return %arg0, %c0_i32, %c0_i32_0 : i32, i32, i32
  }
}

</mosaic_0001>

<llo_original>
// kernel: tile.8
$region0: #{tile.8}
  #allocation0 [shape = 's32[1]{0}', space=sflag, size = 0x4, scoped, tag = 'scoped memory for tile.8']
  %s0 = inlined_call_operand.vmem [shape: f32[10], index: 0, kind: input, shape index: {}]
  %s1 = inlined_call_operand.vmem [shape: f32[12,10], index: 1, kind: output, shape index: {}]
  // Predicated region
  $region2: #{tile.8} parent=0 // pred_check
    _
  $region3: #{tile.8} parent=0 // pred_check_branch
    %3 = sbr.rel (0) target = $region5
  $region4: #{tile.8} parent=0 // pred_region
    _
  $region5: #{tile.8} parent=0 // pred_fallthru
    _
  %v4 = vld [vmem:[%s0] ss:$0 sm:$0xff]
  %5 = vst [vmem:[%s1] sm:$0xff] %v4
  %s6 = scalar_lea.vmem %s1, 8
  %7 = vst [vmem:[%s6] sm:$0xff] %v4

// kernel: tile.9
$region0: #{tile.9}
  %s0 = inlined_call_operand.vmem [shape: f32[12,10], index: 0, kind: input, shape index: {}]
  %s1 = inlined_call_operand.vmem [shape: f32[1,120], index: 1, kind: output, shape index: {}]
  $region1: #{tile.9} parent=0
    #allocation0 [shape = 'u8[4096]{0}', space=vmem, size = 0x1000, scoped, tag = 'scoped mem for output reshape']
    %v2 = vld [vmem:[%s0] sm:$0x1]
    %vm3 = vcmask 80896
    %4 = vst.msk [vmem:[#allocation0] sm:$0x1] %vm3, %v2
    %s5 = scalar_lea.vmem %s0, 11
    %v6 = vld [vmem:[%s5] sm:$0x1]
    %7 = vrot.lane.b32.xlu0 %v6, 110
    %v8 = vpop.permute.xlu0 %7
    %vm9 = vcmask 982896
    %10 = vst.msk [vmem:[#allocation0] sm:$0x1] %vm9, %v8
    %s11 = scalar_lea.vmem %s0, 10
    %v12 = vld [vmem:[%s11] sm:$0x1]
    %13 = vrot.lane.b32.xlu0 %v12, 100
    %v14 = vpop.permute.xlu0 %13
    %vm15 = vcmask 900896
    %16 = vst.msk [vmem:[#allocation0] sm:$0x1] %vm15, %v14
    %s17 = scalar_lea.vmem %s0, 9
    %v18 = vld [vmem:[%s17] sm:$0x1]
    %19 = vrot.lane.b32.xlu0 %v18, 90
    %v20 = vpop.permute.xlu0 %19
    %vm21 = vcmask 818896
    %22 = vst.msk [vmem:[#allocation0] sm:$0x1] %vm21, %v20
    %s23 = scalar_lea.vmem %s0, 8
    %v24 = vld [vmem:[%s23] sm:$0x1]
    %25 = vrot.lane.b32.xlu0 %v24, 80
    %v26 = vpop.permute.xlu0 %25
    %vm27 = vcmask 736896
    %28 = vst.msk [vmem:[#allocation0] sm:$0x1] %vm27, %v26
    %s29 = scalar_lea.vmem %s0, 7
    %v30 = vld [vmem:[%s29] sm:$0x1]
    %31 = vrot.lane.b32.xlu0 %v30, 70
    %v32 = vpop.permute.xlu0 %31
    %vm33 = vcmask 654896
    %34 = vst.msk [vmem:[#allocation0] sm:$0x1] %vm33, %v32
    %s35 = scalar_lea.vmem %s0, 6
    %v36 = vld [vmem:[%s35] sm:$0x1]
    %37 = vrot.lane.b32.xlu0 %v36, 60
    %v38 = vpop.permute.xlu0 %37
    %vm39 = vcmask 572896
    %40 = vst.msk [vmem:[#allocation0] sm:$0x1] %vm39, %v38
    %s41 = scalar_lea.vmem %s0, 5
    %v42 = vld [vmem:[%s41] sm:$0x1]
    %43 = vrot.lane.b32.xlu0 %v42, 50
    %v44 = vpop.permute.xlu0 %43
    %vm45 = vcmask 490896
    %46 = vst.msk [vmem:[#allocation0] sm:$0x1] %vm45, %v44
    %s47 = scalar_lea.vmem %s0, 4
    %v48 = vld [vmem:[%s47] sm:$0x1]
    %49 = vrot.lane.b32.xlu0 %v48, 40
    %v50 = vpop.permute.xlu0 %49
    %vm51 = vcmask 408896
    %52 = vst.msk [vmem:[#allocation0] sm:$0x1] %vm51, %v50
    %s53 = scalar_lea.vmem %s0, 3
    %v54 = vld [vmem:[%s53] sm:$0x1]
    %55 = vrot.lane.b32.xlu0 %v54, 30
    %v56 = vpop.permute.xlu0 %55
    %vm57 = vcmask 326896
    %58 = vst.msk [vmem:[#allocation0] sm:$0x1] %vm57, %v56
    %s59 = scalar_lea.vmem %s0, 2
    %v60 = vld [vmem:[%s59] sm:$0x1]
    %61 = vrot.lane.b32.xlu0 %v60, 20
    %v62 = vpop.permute.xlu0 %61
    %vm63 = vcmask 244896
    %64 = vst.msk [vmem:[#allocation0] sm:$0x1] %vm63, %v62
    %s65 = scalar_lea.vmem %s0, 1
    %v66 = vld [vmem:[%s65] sm:$0x1]
    %67 = vrot.lane.b32.xlu0 %v66, 10
    %v68 = vpop.permute.xlu0 %67
    %vm69 = vcmask 162896
    %70 = vst.msk [vmem:[#allocation0] sm:$0x1] %vm69, %v68
    %s72 = sshll.u32 1, 1
    %s73 = ssub.s32 %s72, 1
    %v75 = vld [vmem:[#allocation0] sm:%s73]
    %s76 = sshll.u32 1, 1
    %s77 = ssub.s32 %s76, 1
    %78 = vst [vmem:[%s1] sm:%s77] %v75

// kernel: simple_model_forward.1
$region0: #{simple_model_forward.1}
  #allocation0 [shape = 'u32[]', space=smem, size = 0x4, offset = 0x4, fixed_abs, tag = 'smem constant byte address 0x4 - core index']
  #allocation1 [shape = 'u32[144,128]{1,0:T(1,128)}', space=vmem, size = 0x12000, scoped, tag = 'internal scratch']
  %s0 = inlined_call_operand.vmem [shape: f32[2,120], index: 0, kind: input, shape index: {}]
  %s1 = inlined_call_operand.vmem [shape: f32[120,120], index: 1, kind: input, shape index: {}]
  %s2 = inlined_call_operand.vmem [shape: f32[1,120], index: 2, kind: input, shape index: {}]
  %s3 = inlined_call_operand.vmem [shape: f32[2,120], index: 3, kind: input, shape index: {}]
  %s4 = inlined_call_operand.vmem [shape: f32[1,1,120], index: 4, kind: output, shape index: {}]
  %s5 = sld [smem:[#allocation0]]
  $region26: #{simple_model_forward.1} parent=0
    _
  %s7 = ssub.s32 1, %s5
  %s8 = scalar_select 0, %s7, %s5
  // Predicated region
  $region2: #{simple_model_forward.1} parent=0 // pred_check
    _
  $region3: #{simple_model_forward.1} parent=0 // pred_check_branch
    %10 = sbr.rel (0) target = $region5
  $region4: #{simple_model_forward.1} parent=0 // pred_region
    _
  $region5: #{simple_model_forward.1} parent=0 // pred_fallthru
    _
  // Predicated region
  $region6: #{simple_model_forward.1} parent=0 // pred_check
    _
  $region7: #{simple_model_forward.1} parent=0 // pred_check_branch
    %12 = sbr.rel (0) target = $region9
  $region8: #{simple_model_forward.1} parent=0 // pred_region
    _
  $region9: #{simple_model_forward.1} parent=0 // pred_fallthru
    _
  // Predicated region
  $region10: #{simple_model_forward.1} parent=0 // pred_check
    _
  $region11: #{simple_model_forward.1} parent=0 // pred_check_branch
    %14 = sbr.rel (0) target = $region13
  $region12: #{simple_model_forward.1} parent=0 // pred_region
    _
  $region13: #{simple_model_forward.1} parent=0 // pred_fallthru
    _
  // Predicated region
  $region14: #{simple_model_forward.1} parent=0 // pred_check
    _
  $region15: #{simple_model_forward.1} parent=0 // pred_check_branch
    %16 = sbr.rel (0) target = $region17
  $region16: #{simple_model_forward.1} parent=0 // pred_region
    _
  $region17: #{simple_model_forward.1} parent=0 // pred_fallthru
    _
  %v17 = vld [vmem:[%s0] sm:$0x3]
  %v18 = vld [vmem:[%s1] sm:$0xff]
  %v19 = vld [vmem:[%s1 + $0x8] sm:$0xff]
  %v20 = vld [vmem:[%s1 + $0x10] sm:$0xff]
  %v21 = vld [vmem:[%s1 + $0x18] sm:$0xff]
  %v22 = vld [vmem:[%s1 + $0x20] sm:$0xff]
  %v23 = vld [vmem:[%s1 + $0x28] sm:$0xff]
  %v24 = vld [vmem:[%s1 + $0x30] sm:$0xff]
  %v25 = vld [vmem:[%s1 + $0x38] sm:$0xff]
  %v26 = vld [vmem:[%s1 + $0x40] sm:$0xff]
  %v27 = vld [vmem:[%s1 + $0x48] sm:$0xff]
  %v28 = vld [vmem:[%s1 + $0x50] sm:$0xff]
  %v29 = vld [vmem:[%s1 + $0x58] sm:$0xff]
  %v30 = vld [vmem:[%s1 + $0x60] sm:$0xff]
  %v31 = vld [vmem:[%s1 + $0x68] sm:$0xff]
  %v32 = vld [vmem:[%s1 + $0x70] sm:$0xff]
  %v33 = vld [vmem:[%s2] sm:$0x1]
  %v35 = vlaneseq
  %v36 = vshrl.u32 %v35, 7
  %v37 = vsub.s32 0, %v36
  %v38 = vrot.slane %v33, %v37
  %vm40 = vcmask 982016
  %v42 = vsel %vm40, %v17, 0
  %44 = vmatprep.subr.mxu0 0.0
  %45 = vmatpush1.msra.mxu0 0.0
  %46 = vmatprep.subr.mxu0 0.0
  %47 = vmatpush1.msra.mxu0 %v32
  %48 = vmatprep.subr.mxu0 0.0
  %49 = vmatpush1.msra.mxu0 %v31
  %50 = vmatprep.subr.mxu0 0.0
  %51 = vmatpush1.msra.mxu0 %v30
  %52 = vmatprep.subr.mxu0 0.0
  %53 = vmatpush1.msra.mxu0 %v29
  %54 = vmatprep.subr.mxu0 0.0
  %55 = vmatpush1.msra.mxu0 %v28
  %56 = vmatprep.subr.mxu0 0.0
  %57 = vmatpush1.msra.mxu0 %v27
  %58 = vmatprep.subr.mxu0 0.0
  %59 = vmatpush1.msra.mxu0 %v26
  %60 = vmatprep.subr.mxu0 0.0
  %61 = vmatpush1.msra.mxu0 %v25
  %62 = vmatprep.subr.mxu0 0.0
  %63 = vmatpush1.msra.mxu0 %v24
  %64 = vmatprep.subr.mxu0 0.0
  %65 = vmatpush1.msra.mxu0 %v23
  %66 = vmatprep.subr.mxu0 0.0
  %67 = vmatpush1.msra.mxu0 %v22
  %68 = vmatprep.subr.mxu0 0.0
  %69 = vmatpush1.msra.mxu0 %v21
  %70 = vmatprep.subr.mxu0 0.0
  %71 = vmatpush1.msra.mxu0 %v20
  %72 = vmatprep.subr.mxu0 0.0
  %73 = vmatpush1.msra.mxu0 %v19
  %74 = vmatprep.subr.mxu0 0.0
  %75 = vmatpush1.msra.mxu0 %v18
  %76 = vmatprep.subr.mxu0 0.0
  %77 = vmatpush2.msra.mxu0 0.0
  %78 = vmatprep.subr.mxu0 0.0
  %79 = vmatpush2.msra.mxu0 0.0
  %80 = vmatprep.subr.mxu0 0.0
  %81 = vmatpush2.msra.mxu0 0.0
  %82 = vmatprep.subr.mxu0 0.0
  %83 = vmatpush2.msra.mxu0 0.0
  %84 = vmatprep.subr.mxu0 0.0
  %85 = vmatpush2.msra.mxu0 0.0
  %86 = vmatprep.subr.mxu0 0.0
  %87 = vmatpush2.msra.mxu0 0.0
  %88 = vmatprep.subr.mxu0 0.0
  %89 = vmatpush2.msra.mxu0 0.0
  %90 = vmatprep.subr.mxu0 0.0
  %91 = vmatpush2.msra.mxu0 0.0
  %92 = vmatprep.subr.mxu0 0.0
  %93 = vmatpush2.msra.mxu0 0.0
  %94 = vmatprep.subr.mxu0 0.0
  %95 = vmatpush2.msra.mxu0 0.0
  %96 = vmatprep.subr.mxu0 0.0
  %97 = vmatpush2.msra.mxu0 0.0
  %98 = vmatprep.subr.mxu0 0.0
  %99 = vmatpush2.msra.mxu0 0.0
  %100 = vmatprep.subr.mxu0 0.0
  %101 = vmatpush2.msra.mxu0 0.0
  %102 = vmatprep.subr.mxu0 0.0
  %103 = vmatpush2.msra.mxu0 0.0
  %104 = vmatprep.subr.mxu0 0.0
  %105 = vmatpush2.msra.mxu0 0.0
  %106 = vmatprep.subr.mxu0 0.0
  %107 = vmatpush2.msra.mxu0 0.0
  %108 = vmatprep.mubr.f32.mxu0 0.0
  %109 = vmatmul.mubr.f32.gmra.mxu0 %v42
  %v110 = vpop.f32.mrf.mxu0
  %v111 = vadd.f32 %v38, %v110
  %v112 = vpop.f32.mrf.mxu0
  %113 = vdwg.mxu0
  %v114 = vld [vmem:[%s3] sm:$0x3]
  %v115 = vsub.f32 %v111, %v114
  %v116 = vlaneseq
  %v117 = vshrl.u32 %v116, 7
  %v118 = vlaneseq
  %v119 = vand.u32 %v118, 127
  %s120 = smul.u32 0, 240
  %v121 = vmul.u32 %v117, 120
  %v122 = vstv %s120
  %v123 = vadd.s32 %v122, %v121
  %v124 = vadd.s32 %v123, %v119
  %vm125 = vcmp.lt.s32.totalorder %v124, 160
  %v126 = vsel %vm125, %v115, 0.0
  %v127 = vmul.f32 %v126, %v126
  %vm128 = vcmask 975872
  %v129 = vsel %vm128, %v127, 0.0
  %v130 = vrot.slane %v129, 4
  %v131 = vadd.f32 %v129, %v130
  %v132 = vrot.slane %v131, 2
  %v133 = vadd.f32 %v131, %v132
  %v134 = vrot.slane %v133, 1
  %v135 = vadd.f32 %v133, %v134
  %vm136 = vcmask 974848
  %137 = vst.msk [vmem:[%s4] sm:$0x1] %vm136, %v135
  // Predicated region
  $region18: #{simple_model_forward.1} parent=0 // pred_check
    _
  $region19: #{simple_model_forward.1} parent=0 // pred_check_branch
    %139 = sbr.rel (0) target = $region21
  $region20: #{simple_model_forward.1} parent=0 // pred_region
    _
  $region21: #{simple_model_forward.1} parent=0 // pred_fallthru
    _
  // Predicated region
  $region22: #{simple_model_forward.1} parent=0 // pred_check
    _
  $region23: #{simple_model_forward.1} parent=0 // pred_check_branch
    %141 = sbr.rel (0) target = $region25
  $region24: #{simple_model_forward.1} parent=0 // pred_region
    _
  $region25: #{simple_model_forward.1} parent=0 // pred_fallthru
    _

</llo_original>
